<compile_context>
chip_gen: v6e
topology: v6e:2x2x1
jax: 0.10.0
libtpu: 0.0.40
codegen_flags: <defaults>
</compile_context>

<pallas_src>
import jax
import jax.numpy as jnp
from jax.experimental import pallas as pl
from jax.experimental.pallas import tpu as pltpu

LANE = 128
EPS = 1e-5  # nn.BatchNorm1d default


def _round_up(n, m):
    return ((n + m - 1) // m) * m


# ----------------------------------------------------------------------------- kernel
def olivettiface_kernel(x_ref, w_ref, pvec_ref, out_ref):
    batch, in_size = x_ref.shape
    total_rows, width = w_ref.shape
    w_dtype = w_ref.dtype

    # Static, sublane-aligned slices of the packed operands (views into VMEM).
    w1 = w_ref[0:in_size, :]                  # [in, width]     padded hidden cols == 0
    w2 = w_ref[in_size:total_rows, :]         # [width, width]  padded rows/cols == 0
    gamma = pvec_ref[0:1, :]                  # [1, width]
    beta = pvec_ref[1:2, :]                   # [1, width]
    b2 = pvec_ref[2:3, :]                     # [1, width]

    # --- linear_1 (bias omitted: training-mode BN batch-mean centering cancels it) ----
    h = jnp.dot(x_ref[...].astype(w_dtype), w1,
                preferred_element_type=jnp.float32)                     # [B, width] f32

    # --- BatchNorm1d, training mode: two-pass stats computed on the MXU ---------------
    ones = jnp.ones((8, batch), jnp.float32)
    inv_n = 1.0 / batch
    mean = jnp.dot(ones, h, preferred_element_type=jnp.float32)[0:1, :] * inv_n
    c = h - mean                                                        # centered
    var = jnp.dot(ones, c * c, preferred_element_type=jnp.float32)[0:1, :] * inv_n
    scale = jax.lax.rsqrt(var + EPS) * gamma                            # [1, width]

    # Folded affine + ReLU: one FMA + one max per element of the [B, width] tensor.
    act = jnp.maximum(c * scale + beta, 0.0)

    # --- linear_2 ----------------------------------------------------------------------
    out = jnp.dot(act.astype(w_dtype), w2, preferred_element_type=jnp.float32) + b2
    out_ref[...] = out.astype(out_ref.dtype)                            # dense [B, width] store


# ----------------------------------------------------------------------------- wrappers
def init_params(key, input_size, hidden_size, output_size):
    """PyTorch-style init (Linear: U[-1/sqrt(fan_in), +], BN: gamma=1, beta=0)."""
    k1, k2, k3, k4 = jax.random.split(key, 4)
    b1n = 1.0 / (input_size ** 0.5)
    b2n = 1.0 / (hidden_size ** 0.5)
    return {
        "w1": jax.random.uniform(k1, (input_size, hidden_size), jnp.float32, -b1n, b1n),
        "b1": jax.random.uniform(k2, (1, hidden_size), jnp.float32, -b1n, b1n),
        "gamma": jnp.ones((1, hidden_size), jnp.float32),
        "beta": jnp.zeros((1, hidden_size), jnp.float32),
        "w2": jax.random.uniform(k3, (hidden_size, output_size), jnp.float32, -b2n, b2n),
        "b2": jax.random.uniform(k4, (1, output_size), jnp.float32, -b2n, b2n),
    }


def prepare_params(params, mxu_dtype=jnp.float32):
    """Pack params into one weight slab + one [8,128] per-feature block (done once).

    b1 is intentionally dropped: training-mode BatchNorm's batch-mean subtraction cancels
    it exactly.  All padding is with zeros so padded lanes stay exactly zero end-to-end.
    """
    w1, gamma, beta, w2, b2 = (params["w1"], params["gamma"], params["beta"],
                               params["w2"], params["b2"])
    in_size, hidden = w1.shape
    _, out_size = w2.shape
    width = _round_up(max(hidden, out_size), LANE)

    def pad2(a, rows, cols):
        return jnp.pad(a, ((0, rows - a.shape[0]), (0, cols - a.shape[1])))

    w1p = pad2(w1, in_size, width)                                   # [in, width]
    w2p = pad2(w2, width, width)                                     # [width, width]
    w_slab = jnp.concatenate([w1p, w2p], axis=0).astype(mxu_dtype)   # [in+width, width]

    pvec = jnp.zeros((8, width), jnp.float32)
    pvec = pvec.at[0, :hidden].set(gamma[0])
    pvec = pvec.at[1, :hidden].set(beta[0])
    pvec = pvec.at[2, :out_size].set(b2[0])

    return {"w": w_slab, "pvec": pvec, "out_size": out_size}


@jax.jit
def olivettiface_forward(x, w_slab, pvec):
    """x: [B, input_size] f32 -> padded logits [B, width] f32.

    Real logits are columns [:output_size]; padded columns are exactly zero, so
    downstream argmax / masked CrossEntropy can consume the padded block directly
    (no slice HLO inside the hot path).
    """
    B = x.shape[0]
    width = w_slab.shape[1]
    vmem = pl.BlockSpec(memory_space=pltpu.MemorySpace.VMEM)
    return pl.pallas_call(
        olivettiface_kernel,
        out_shape=jax.ShapeDtypeStruct((B, width), jnp.float32),
        in_specs=[vmem, vmem, vmem],
        out_specs=vmem,
    )(x, w_slab, pvec)


def reference_forward(x, params):
    """Pure-JAX reference with the original (un-padded, bias-included) math."""
    h = x @ params["w1"] + params["b1"]
    mean = jnp.mean(h, axis=0, keepdims=True)
    var = jnp.mean((h - mean) ** 2, axis=0, keepdims=True)
    bn = (h - mean) * jax.lax.rsqrt(var + EPS) * params["gamma"] + params["beta"]
    act = jnp.maximum(bn, 0.0)
    return act @ params["w2"] + params["b2"]


# ----------------------------------------------------------------------------- main
if __name__ == "__main__":
    # Small shapes consistent with the module; batch large enough to fill sublanes.
    B, INPUT, HIDDEN, OUTPUT = 64, 64, 32, 16

    key = jax.random.PRNGKey(0)
    kx, kp = jax.random.split(key)
    x = jax.random.normal(kx, (B, INPUT), jnp.float32)
    params = init_params(kp, INPUT, HIDDEN, OUTPUT)
    ref = reference_forward(x, params)

    # ---- f32 MXU path: bit-tight check vs reference -----------------------------------
    packed = prepare_params(params, mxu_dtype=jnp.float32)
    logits_padded = olivettiface_forward(x, packed["w"], packed["pvec"])
    jax.block_until_ready(logits_padded)

    out_size = packed["out_size"]
    logits = logits_padded[:, :out_size]          # slice only for the test, outside jit
    assert logits.shape == (B, OUTPUT)
    assert jnp.allclose(logits, ref, atol=1e-4, rtol=1e-4), "f32 path mismatch vs reference"
    assert bool(jnp.all(logits_padded[:, out_size:] == 0.0)), "padded lanes leaked"

    # ---- bf16 MXU path (f32 accumulate): looser tolerance ------------------------------
    packed_bf16 = prepare_params(params, mxu_dtype=jnp.bfloat16)
    logits_bf16 = olivettiface_forward(x, packed_bf16["w"], packed_bf16["pvec"])
    jax.block_until_ready(logits_bf16)
    assert jnp.allclose(logits_bf16[:, :out_size], ref, atol=5e-2, rtol=5e-2), \
        "bf16 path mismatch vs reference"

    # TODO(synk): CrossEntropyLoss branch (y is not None) omitted — the kernel implements
    # the inference/logits path of forward().
    print("KERNEL_OK")
</pallas_src>

<mosaic_0001>
module attributes {stable_mosaic.version = 11 : i64} {
  func.func @olivettiface_kernel(%arg0: memref<64x64xf32, #tpu.memory_space<vmem>>, %arg1: memref<192x128xf32, #tpu.memory_space<vmem>>, %arg2: memref<8x128xf32, #tpu.memory_space<vmem>>, %arg3: memref<64x128xf32, #tpu.memory_space<vmem>>) attributes {dimension_semantics = [], scalar_prefetch = 0 : i64, scratch_operands = 0 : i64, tpu.core_type = #tpu.core_type<tc>} {
    %c0 = arith.constant 0 : index
    %c0_0 = arith.constant 0 : index
    %0 = vector.load %arg1[%c0, %c0_0] : memref<192x128xf32, #tpu.memory_space<vmem>>, vector<64x128xf32>
    %c64 = arith.constant 64 : index
    %c0_1 = arith.constant 0 : index
    %1 = vector.load %arg1[%c64, %c0_1] : memref<192x128xf32, #tpu.memory_space<vmem>>, vector<128x128xf32>
    %c0_2 = arith.constant 0 : index
    %c0_3 = arith.constant 0 : index
    %2 = vector.load %arg2[%c0_2, %c0_3] : memref<8x128xf32, #tpu.memory_space<vmem>>, vector<1x128xf32>
    %c1 = arith.constant 1 : index
    %c0_4 = arith.constant 0 : index
    %3 = vector.load %arg2[%c1, %c0_4] : memref<8x128xf32, #tpu.memory_space<vmem>>, vector<1x128xf32>
    %c2 = arith.constant 2 : index
    %c0_5 = arith.constant 0 : index
    %4 = vector.load %arg2[%c2, %c0_5] : memref<8x128xf32, #tpu.memory_space<vmem>>, vector<1x128xf32>
    %c0_6 = arith.constant 0 : index
    %c0_7 = arith.constant 0 : index
    %5 = vector.load %arg0[%c0_6, %c0_7] : memref<64x64xf32, #tpu.memory_space<vmem>>, vector<64x64xf32>
    %cst = arith.constant dense<0.000000e+00> : vector<64x128xf32>
    %6 = tpu.matmul %5, %0, %cst {dimension_numbers = #tpu.dot_dimension_numbers<[1], [0], [0], [1], [0, 0, 1, 1], [], []>} : vector<64x64xf32>, vector<64x128xf32>, vector<64x128xf32> -> vector<64x128xf32>
    %cst_8 = arith.constant 1.000000e+00 : f32
    %7 = vector.broadcast %cst_8 : f32 to vector<8x64xf32>
    %cst_9 = arith.constant dense<0.000000e+00> : vector<8x128xf32>
    %8 = tpu.matmul %7, %6, %cst_9 {dimension_numbers = #tpu.dot_dimension_numbers<[1], [0], [0], [1], [0, 0, 1, 1], [], []>} : vector<8x64xf32>, vector<64x128xf32>, vector<8x128xf32> -> vector<8x128xf32>
    %9 = vector.extract_strided_slice %8 {offsets = [0, 0], sizes = [1, 128], strides = [1, 1]} : vector<8x128xf32> to vector<1x128xf32>
    %cst_10 = arith.constant 1.562500e-02 : f32
    %10 = vector.broadcast %cst_10 : f32 to vector<1x128xf32>
    %11 = arith.mulf %9, %10 : vector<1x128xf32>
    %12 = vector.broadcast %11 : vector<1x128xf32> to vector<64x128xf32>
    %13 = arith.subf %6, %12 : vector<64x128xf32>
    %14 = arith.mulf %13, %13 : vector<64x128xf32>
    %cst_11 = arith.constant dense<0.000000e+00> : vector<8x128xf32>
    %15 = tpu.matmul %7, %14, %cst_11 {dimension_numbers = #tpu.dot_dimension_numbers<[1], [0], [0], [1], [0, 0, 1, 1], [], []>} : vector<8x64xf32>, vector<64x128xf32>, vector<8x128xf32> -> vector<8x128xf32>
    %16 = vector.extract_strided_slice %15 {offsets = [0, 0], sizes = [1, 128], strides = [1, 1]} : vector<8x128xf32> to vector<1x128xf32>
    %cst_12 = arith.constant 1.562500e-02 : f32
    %17 = vector.broadcast %cst_12 : f32 to vector<1x128xf32>
    %18 = arith.mulf %16, %17 : vector<1x128xf32>
    %cst_13 = arith.constant 9.99999974E-6 : f32
    %19 = vector.broadcast %cst_13 : f32 to vector<1x128xf32>
    %20 = arith.addf %18, %19 : vector<1x128xf32>
    %21 = math.rsqrt %20 : vector<1x128xf32>
    %22 = arith.mulf %21, %2 : vector<1x128xf32>
    %23 = vector.broadcast %22 : vector<1x128xf32> to vector<64x128xf32>
    %24 = arith.mulf %13, %23 : vector<64x128xf32>
    %25 = vector.broadcast %3 : vector<1x128xf32> to vector<64x128xf32>
    %26 = arith.addf %24, %25 : vector<64x128xf32>
    %cst_14 = arith.constant 0.000000e+00 : f32
    %27 = vector.broadcast %cst_14 : f32 to vector<64x128xf32>
    %28 = arith.maximumf %26, %27 : vector<64x128xf32>
    %cst_15 = arith.constant dense<0.000000e+00> : vector<64x128xf32>
    %29 = tpu.matmul %28, %1, %cst_15 {dimension_numbers = #tpu.dot_dimension_numbers<[1], [0], [0], [1], [0, 0, 1, 1], [], []>} : vector<64x128xf32>, vector<128x128xf32>, vector<64x128xf32> -> vector<64x128xf32>
    %30 = vector.broadcast %4 : vector<1x128xf32> to vector<64x128xf32>
    %31 = arith.addf %29, %30 : vector<64x128xf32>
    %c0_16 = arith.constant 0 : index
    %c0_17 = arith.constant 0 : index
    %32 = vector.load %arg3[%c0_16, %c0_17] : memref<64x128xf32, #tpu.memory_space<vmem>>, vector<64x128xf32>
    tpu.vector_store %arg3[%c0_16, %c0_17], %31 {strides = array<i32>} : memref<64x128xf32, #tpu.memory_space<vmem>>, vector<64x128xf32>,
    return
  }
}

</mosaic_0001>

<llo_original>
// kernel: olivettiface_forward.1
$region0: #{olivettiface_forward.1}
  #allocation0 [shape = 'u32[]', space=smem, size = 0x4, offset = 0x4, fixed_abs, tag = 'smem constant byte address 0x4 - core index']
  #allocation1 [shape = 'u32[144,128]{1,0:T(1,128)}', space=vmem, size = 0x12000, scoped, tag = 'internal scratch']
  %s0 = inlined_call_operand.hbm [shape: f32[64,64], index: 0, kind: input, shape index: {}]
  %s1 = inlined_call_operand.hbm [shape: f32[192,128], index: 1, kind: input, shape index: {}]
  %s2 = inlined_call_operand.hbm [shape: f32[8,128], index: 2, kind: input, shape index: {}]
  %s3 = inlined_call_operand.hbm [shape: f32[64,128], index: 3, kind: output, shape index: {}]
  %s4 = sld [smem:[#allocation0]]
  $region34: #{olivettiface_forward.1} parent=0
    _
  %s6 = ssub.s32 1, %s4
  %s7 = scalar_select 0, %s6, %s4
  $region1: #{olivettiface_forward.1} parent=0
    #allocation2 [shape = 'u8[32768]{0}', space=vmem, size = 0x8000, scoped, tag = 'input window, operand 0, single buffered']
    #allocation3 [shape = 's32[1]{0}', space=sflag, size = 0x4, scoped, tag = 'scoped memory for olivettiface_forward.1']
    #allocation4 [shape = 's32[1]{0}', space=sflag, size = 0x4, scoped, tag = 'scoped memory for olivettiface_forward.1']
    #allocation5 [shape = 'u8[98304]{0}', space=vmem, size = 0x18000, scoped, tag = 'input window, operand 1, single buffered']
    #allocation6 [shape = 's32[1]{0}', space=sflag, size = 0x4, scoped, tag = 'scoped memory for olivettiface_forward.1']
    #allocation7 [shape = 'u8[4096]{0}', space=vmem, size = 0x1000, scoped, tag = 'input window, operand 2, single buffered']
    #allocation8 [shape = 'u8[32768]{0}', space=vmem, size = 0x8000, scoped, tag = 'output window, operand 0, single buffered']
    %8 = vsyncpa [#allocation3], 0
    %9 = vsyncpa [#allocation6], 0
    %10 = vsyncpa [#allocation4], 0
    // Predicated region
    $region2: #{olivettiface_forward.1} parent=1 // pred_check
      _
    $region3: #{olivettiface_forward.1} parent=1 // pred_check_branch
      %12 = sbr.rel (0) target = $region5
    $region4: #{olivettiface_forward.1} parent=1 // pred_region
      %s14 = ssub.s32 1024, 1024
      %15 = vsyncadd [#allocation3], %s14
      %s16 = sshll.u32 [#allocation2], 4
      %s17 = int_to_ptr.vmem [resolvable:$true] %s16
      %22 = dma.hbm_to_vmem [thread:$0]  %s0, 1024, %s17, [#allocation3], 128, 128, 8
    $region5: #{olivettiface_forward.1} parent=1 // pred_fallthru
      _
    // Predicated region
    $region6: #{olivettiface_forward.1} parent=1 // pred_check
      _
    $region7: #{olivettiface_forward.1} parent=1 // pred_check_branch
      %24 = sbr.rel (0) target = $region9
    $region8: #{olivettiface_forward.1} parent=1 // pred_region
      %s26 = ssub.s32 3072, 3072
      %27 = vsyncadd [#allocation6], %s26
      %s28 = sshll.u32 [#allocation5], 4
      %s29 = int_to_ptr.vmem [resolvable:$true] %s28
      %34 = dma.hbm_to_vmem [thread:$0]  %s1, 3072, %s29, [#allocation6], 128, 128, 8
    $region9: #{olivettiface_forward.1} parent=1 // pred_fallthru
      _
    // Predicated region
    $region10: #{olivettiface_forward.1} parent=1 // pred_check
      _
    $region11: #{olivettiface_forward.1} parent=1 // pred_check_branch
      %36 = sbr.rel (0) target = $region13
    $region12: #{olivettiface_forward.1} parent=1 // pred_region
      %s38 = ssub.s32 128, 128
      %39 = vsyncadd [#allocation6], %s38
      %s41 = sshll.u32 [#allocation7], 4
      %s42 = int_to_ptr.vmem [resolvable:$true] %s41
      %44 = dma.hbm_to_vmem [thread:$0]  %s2, 128, %s42, [#allocation6]
    $region13: #{olivettiface_forward.1} parent=1 // pred_fallthru
      _
    // Predicated region
    $region14: #{olivettiface_forward.1} parent=1 // pred_check
      _
    $region15: #{olivettiface_forward.1} parent=1 // pred_check_branch
      %46 = sbr.rel (0) target = $region17
    $region16: #{olivettiface_forward.1} parent=1 // pred_region
      %47 = dma.done [#allocation3], 1024
    $region17: #{olivettiface_forward.1} parent=1 // pred_fallthru
      _
    // Predicated region
    $region18: #{olivettiface_forward.1} parent=1 // pred_check
      _
    $region19: #{olivettiface_forward.1} parent=1 // pred_check_branch
      %49 = sbr.rel (0) target = $region21
    $region20: #{olivettiface_forward.1} parent=1 // pred_region
      %50 = dma.done [#allocation6], 3072
    $region21: #{olivettiface_forward.1} parent=1 // pred_fallthru
      _
    // Predicated region
    $region22: #{olivettiface_forward.1} parent=1 // pred_check
      _
    $region23: #{olivettiface_forward.1} parent=1 // pred_check_branch
      %52 = sbr.rel (0) target = $region25
    $region24: #{olivettiface_forward.1} parent=1 // pred_region
      %53 = dma.done [#allocation6], 128
    $region25: #{olivettiface_forward.1} parent=1 // pred_fallthru
      _
    %v54 = vld [vmem:[#allocation5] sm:$0xff]
    %v55 = vld [vmem:[#allocation5 + $0x8] sm:$0xff]
    %v56 = vld [vmem:[#allocation5 + $0x10] sm:$0xff]
    %v57 = vld [vmem:[#allocation5 + $0x18] sm:$0xff]
    %v58 = vld [vmem:[#allocation5 + $0x20] sm:$0xff]
    %v59 = vld [vmem:[#allocation5 + $0x28] sm:$0xff]
    %v60 = vld [vmem:[#allocation5 + $0x30] sm:$0xff]
    %v61 = vld [vmem:[#allocation5 + $0x38] sm:$0xff]
    %v62 = vld [vmem:[#allocation5 + $0x40] sm:$0xff]
    %v63 = vld [vmem:[#allocation5 + $0x48] sm:$0xff]
    %v64 = vld [vmem:[#allocation5 + $0x50] sm:$0xff]
    %v65 = vld [vmem:[#allocation5 + $0x58] sm:$0xff]
    %v66 = vld [vmem:[#allocation5 + $0x60] sm:$0xff]
    %v67 = vld [vmem:[#allocation5 + $0x68] sm:$0xff]
    %v68 = vld [vmem:[#allocation5 + $0x70] sm:$0xff]
    %v69 = vld [vmem:[#allocation5 + $0x78] sm:$0xff]
    %v70 = vld [vmem:[#allocation5 + $0x80] sm:$0xff]
    %v71 = vld [vmem:[#allocation5 + $0x88] sm:$0xff]
    %v72 = vld [vmem:[#allocation5 + $0x90] sm:$0xff]
    %v73 = vld [vmem:[#allocation5 + $0x98] sm:$0xff]
    %v74 = vld [vmem:[#allocation5 + $0xa0] sm:$0xff]
    %v75 = vld [vmem:[#allocation5 + $0xa8] sm:$0xff]
    %v76 = vld [vmem:[#allocation5 + $0xb0] sm:$0xff]
    %v77 = vld [vmem:[#allocation5 + $0xb8] sm:$0xff]
    %v78 = vld [vmem:[#allocation7] sm:$0x1]
    %v79 = vld [vmem:[#allocation7 + $0x1] sm:$0x1]
    %v80 = vld [vmem:[#allocation7 + $0x2] sm:$0x1]
    %v81 = vld [vmem:[#allocation2] sm:$0xff]
    %v82 = vld [vmem:[#allocation2 + $0x8] sm:$0xff]
    %v83 = vld [vmem:[#allocation2 + $0x10] sm:$0xff]
    %v84 = vld [vmem:[#allocation2 + $0x18] sm:$0xff]
    %v85 = vld [vmem:[#allocation2 + $0x20] sm:$0xff]
    %v86 = vld [vmem:[#allocation2 + $0x28] sm:$0xff]
    %v87 = vld [vmem:[#allocation2 + $0x30] sm:$0xff]
    %v88 = vld [vmem:[#allocation2 + $0x38] sm:$0xff]
    %vm89 = vcmask 523264
    %v91 = vsel %vm89, %v81, 0
    %v94 = vsel %vm89, %v82, 0
    %v97 = vsel %vm89, %v83, 0
    %v100 = vsel %vm89, %v84, 0
    %v103 = vsel %vm89, %v85, 0
    %v106 = vsel %vm89, %v86, 0
    %v109 = vsel %vm89, %v87, 0
    %v112 = vsel %vm89, %v88, 0
    %114 = vmatprep.subr.mxu0 0.0
    %115 = vmatpush1.msra.mxu0 0.0
    %116 = vmatprep.subr.mxu0 0.0
    %117 = vmatpush1.msra.mxu0 0.0
    %118 = vmatprep.subr.mxu0 0.0
    %119 = vmatpush1.msra.mxu0 0.0
    %120 = vmatprep.subr.mxu0 0.0
    %121 = vmatpush1.msra.mxu0 0.0
    %122 = vmatprep.subr.mxu0 0.0
    %123 = vmatpush1.msra.mxu0 0.0
    %124 = vmatprep.subr.mxu0 0.0
    %125 = vmatpush1.msra.mxu0 0.0
    %126 = vmatprep.subr.mxu0 0.0
    %127 = vmatpush1.msra.mxu0 0.0
    %128 = vmatprep.subr.mxu0 0.0
    %129 = vmatpush1.msra.mxu0 0.0
    %130 = vmatprep.subr.mxu0 0.0
    %131 = vmatpush1.msra.mxu0 %v61
    %132 = vmatprep.subr.mxu0 0.0
    %133 = vmatpush1.msra.mxu0 %v60
    %134 = vmatprep.subr.mxu0 0.0
    %135 = vmatpush1.msra.mxu0 %v59
    %136 = vmatprep.subr.mxu0 0.0
    %137 = vmatpush1.msra.mxu0 %v58
    %138 = vmatprep.subr.mxu0 0.0
    %139 = vmatpush1.msra.mxu0 %v57
    %140 = vmatprep.subr.mxu0 0.0
    %141 = vmatpush1.msra.mxu0 %v56
    %142 = vmatprep.subr.mxu0 0.0
    %143 = vmatpush1.msra.mxu0 %v55
    %144 = vmatprep.subr.mxu0 0.0
    %145 = vmatpush1.msra.mxu0 %v54
    %146 = vmatprep.subr.mxu0 0.0
    %147 = vmatpush2.msra.mxu0 0.0
    %148 = vmatprep.subr.mxu0 0.0
    %149 = vmatpush2.msra.mxu0 0.0
    %150 = vmatprep.subr.mxu0 0.0
    %151 = vmatpush2.msra.mxu0 0.0
    %152 = vmatprep.subr.mxu0 0.0
    %153 = vmatpush2.msra.mxu0 0.0
    %154 = vmatprep.subr.mxu0 0.0
    %155 = vmatpush2.msra.mxu0 0.0
    %156 = vmatprep.subr.mxu0 0.0
    %157 = vmatpush2.msra.mxu0 0.0
    %158 = vmatprep.subr.mxu0 0.0
    %159 = vmatpush2.msra.mxu0 0.0
    %160 = vmatprep.subr.mxu0 0.0
    %161 = vmatpush2.msra.mxu0 0.0
    %162 = vmatprep.subr.mxu0 0.0
    %163 = vmatpush2.msra.mxu0 0.0
    %164 = vmatprep.subr.mxu0 0.0
    %165 = vmatpush2.msra.mxu0 0.0
    %166 = vmatprep.subr.mxu0 0.0
    %167 = vmatpush2.msra.mxu0 0.0
    %168 = vmatprep.subr.mxu0 0.0
    %169 = vmatpush2.msra.mxu0 0.0
    %170 = vmatprep.subr.mxu0 0.0
    %171 = vmatpush2.msra.mxu0 0.0
    %172 = vmatprep.subr.mxu0 0.0
    %173 = vmatpush2.msra.mxu0 0.0
    %174 = vmatprep.subr.mxu0 0.0
    %175 = vmatpush2.msra.mxu0 0.0
    %176 = vmatprep.subr.mxu0 0.0
    %177 = vmatpush2.msra.mxu0 0.0
    %178 = vmatprep.mubr.f32.mxu0 0.0
    %179 = vmatmul.mubr.f32.gmra.mxu0 %v91
    %v180 = vpop.f32.mrf.mxu0
    %v181 = vadd.f32 0.0, %v180
    %v182 = vpop.f32.mrf.mxu0
    %183 = vmatprep.mubr.f32.mxu0 0.0
    %184 = vmatmul.mubr.f32.gmra.mxu0 %v94
    %v185 = vpop.f32.mrf.mxu0
    %v186 = vadd.f32 0.0, %v185
    %v187 = vpop.f32.mrf.mxu0
    %188 = vmatprep.mubr.f32.mxu0 0.0
    %189 = vmatmul.mubr.f32.gmra.mxu0 %v97
    %v190 = vpop.f32.mrf.mxu0
    %v191 = vadd.f32 0.0, %v190
    %v192 = vpop.f32.mrf.mxu0
    %193 = vmatprep.mubr.f32.mxu0 0.0
    %194 = vmatmul.mubr.f32.gmra.mxu0 %v100
    %v195 = vpop.f32.mrf.mxu0
    %v196 = vadd.f32 0.0, %v195
    %v197 = vpop.f32.mrf.mxu0
    %198 = vmatprep.mubr.f32.mxu0 0.0
    %199 = vmatmul.mubr.f32.gmra.mxu0 %v103
    %v200 = vpop.f32.mrf.mxu0
    %v201 = vadd.f32 0.0, %v200
    %v202 = vpop.f32.mrf.mxu0
    %203 = vmatprep.mubr.f32.mxu0 0.0
    %204 = vmatmul.mubr.f32.gmra.mxu0 %v106
    %v205 = vpop.f32.mrf.mxu0
    %v206 = vadd.f32 0.0, %v205
    %v207 = vpop.f32.mrf.mxu0
    %208 = vmatprep.mubr.f32.mxu0 0.0
    %209 = vmatmul.mubr.f32.gmra.mxu0 %v109
    %v210 = vpop.f32.mrf.mxu0
    %v211 = vadd.f32 0.0, %v210
    %v212 = vpop.f32.mrf.mxu0
    %213 = vmatprep.mubr.f32.mxu0 0.0
    %214 = vmatmul.mubr.f32.gmra.mxu0 %v112
    %v215 = vpop.f32.mrf.mxu0
    %v216 = vadd.f32 0.0, %v215
    %v217 = vpop.f32.mrf.mxu0
    %218 = vdwg.mxu0
    %v220 = vsel %vm89, 1.0, 0
    %222 = vmatprep.subr.mxu0 0.0
    %223 = vmatpush1.msra.mxu0 0.0
    %224 = vmatprep.subr.mxu0 0.0
    %225 = vmatpush1.msra.mxu0 0.0
    %226 = vmatprep.subr.mxu0 0.0
    %227 = vmatpush1.msra.mxu0 0.0
    %228 = vmatprep.subr.mxu0 0.0
    %229 = vmatpush1.msra.mxu0 0.0
    %230 = vmatprep.subr.mxu0 0.0
    %231 = vmatpush1.msra.mxu0 0.0
    %232 = vmatprep.subr.mxu0 0.0
    %233 = vmatpush1.msra.mxu0 0.0
    %234 = vmatprep.subr.mxu0 0.0
    %235 = vmatpush1.msra.mxu0 0.0
    %236 = vmatprep.subr.mxu0 0.0
    %237 = vmatpush1.msra.mxu0 0.0
    %238 = vmatprep.subr.mxu0 0.0
    %239 = vmatpush1.msra.mxu0 %v216
    %240 = vmatprep.subr.mxu0 0.0
    %241 = vmatpush1.msra.mxu0 %v211
    %242 = vmatprep.subr.mxu0 0.0
    %243 = vmatpush1.msra.mxu0 %v206
    %244 = vmatprep.subr.mxu0 0.0
    %245 = vmatpush1.msra.mxu0 %v201
    %246 = vmatprep.subr.mxu0 0.0
    %247 = vmatpush1.msra.mxu0 %v196
    %248 = vmatprep.subr.mxu0 0.0
    %249 = vmatpush1.msra.mxu0 %v191
    %250 = vmatprep.subr.mxu0 0.0
    %251 = vmatpush1.msra.mxu0 %v186
    %252 = vmatprep.subr.mxu0 0.0
    %253 = vmatpush1.msra.mxu0 %v181
    %254 = vmatprep.subr.mxu0 0.0
    %255 = vmatpush2.msra.mxu0 0.0
    %256 = vmatprep.subr.mxu0 0.0
    %257 = vmatpush2.msra.mxu0 0.0
    %258 = vmatprep.subr.mxu0 0.0
    %259 = vmatpush2.msra.mxu0 0.0
    %260 = vmatprep.subr.mxu0 0.0
    %261 = vmatpush2.msra.mxu0 0.0
    %262 = vmatprep.subr.mxu0 0.0
    %263 = vmatpush2.msra.mxu0 0.0
    %264 = vmatprep.subr.mxu0 0.0
    %265 = vmatpush2.msra.mxu0 0.0
    %266 = vmatprep.subr.mxu0 0.0
    %267 = vmatpush2.msra.mxu0 0.0
    %268 = vmatprep.subr.mxu0 0.0
    %269 = vmatpush2.msra.mxu0 0.0
    %270 = vmatprep.subr.mxu0 0.0
    %271 = vmatpush2.msra.mxu0 0.0
    %272 = vmatprep.subr.mxu0 0.0
    %273 = vmatpush2.msra.mxu0 0.0
    %274 = vmatprep.subr.mxu0 0.0
    %275 = vmatpush2.msra.mxu0 0.0
    %276 = vmatprep.subr.mxu0 0.0
    %277 = vmatpush2.msra.mxu0 0.0
    %278 = vmatprep.subr.mxu0 0.0
    %279 = vmatpush2.msra.mxu0 0.0
    %280 = vmatprep.subr.mxu0 0.0
    %281 = vmatpush2.msra.mxu0 0.0
    %282 = vmatprep.subr.mxu0 0.0
    %283 = vmatpush2.msra.mxu0 0.0
    %284 = vmatprep.subr.mxu0 0.0
    %285 = vmatpush2.msra.mxu0 0.0
    %286 = vmatprep.mubr.f32.mxu0 0.0
    %287 = vmatmul.mubr.f32.gmra.mxu0 %v220
    %v288 = vpop.f32.mrf.mxu0
    %v289 = vadd.f32 0.0, %v288
    %v290 = vpop.f32.mrf.mxu0
    %291 = vdwg.mxu0
    %v292 = vmul.f32 %v289, 0.015625
    %v293 = vlaneseq
    %v294 = vshrl.u32 %v293, 7
    %v295 = vsub.s32 0, %v294
    %v296 = vrot.slane %v292, %v295
    %v297 = vsub.f32 %v181, %v296
    %v298 = vsub.f32 %v186, %v296
    %v299 = vsub.f32 %v191, %v296
    %v300 = vsub.f32 %v196, %v296
    %v301 = vsub.f32 %v201, %v296
    %v302 = vsub.f32 %v206, %v296
    %v303 = vsub.f32 %v211, %v296
    %v304 = vsub.f32 %v216, %v296
    %v305 = vmul.f32 %v297, %v297
    %v306 = vmul.f32 %v298, %v298
    %v307 = vmul.f32 %v299, %v299
    %v308 = vmul.f32 %v300, %v300
    %v309 = vmul.f32 %v301, %v301
    %v310 = vmul.f32 %v302, %v302
    %v311 = vmul.f32 %v303, %v303
    %v312 = vmul.f32 %v304, %v304
    %313 = vmatprep.subr.mxu0 0.0
    %314 = vmatpush1.msra.mxu0 0.0
    %315 = vmatprep.subr.mxu0 0.0
    %316 = vmatpush1.msra.mxu0 0.0
    %317 = vmatprep.subr.mxu0 0.0
    %318 = vmatpush1.msra.mxu0 0.0
    %319 = vmatprep.subr.mxu0 0.0
    %320 = vmatpush1.msra.mxu0 0.0
    %321 = vmatprep.subr.mxu0 0.0
    %322 = vmatpush1.msra.mxu0 0.0
    %323 = vmatprep.subr.mxu0 0.0
    %324 = vmatpush1.msra.mxu0 0.0
    %325 = vmatprep.subr.mxu0 0.0
    %326 = vmatpush1.msra.mxu0 0.0
    %327 = vmatprep.subr.mxu0 0.0
    %328 = vmatpush1.msra.mxu0 0.0
    %329 = vmatprep.subr.mxu0 0.0
    %330 = vmatpush1.msra.mxu0 %v312
    %331 = vmatprep.subr.mxu0 0.0
    %332 = vmatpush1.msra.mxu0 %v311
    %333 = vmatprep.subr.mxu0 0.0
    %334 = vmatpush1.msra.mxu0 %v310
    %335 = vmatprep.subr.mxu0 0.0
    %336 = vmatpush1.msra.mxu0 %v309
    %337 = vmatprep.subr.mxu0 0.0
    %338 = vmatpush1.msra.mxu0 %v308
    %339 = vmatprep.subr.mxu0 0.0
    %340 = vmatpush1.msra.mxu0 %v307
    %341 = vmatprep.subr.mxu0 0.0
    %342 = vmatpush1.msra.mxu0 %v306
    %343 = vmatprep.subr.mxu0 0.0
    %344 = vmatpush1.msra.mxu0 %v305
    %345 = vmatprep.subr.mxu0 0.0
    %346 = vmatpush2.msra.mxu0 0.0
    %347 = vmatprep.subr.mxu0 0.0
    %348 = vmatpush2.msra.mxu0 0.0
    %349 = vmatprep.subr.mxu0 0.0
    %350 = vmatpush2.msra.mxu0 0.0
    %351 = vmatprep.subr.mxu0 0.0
    %352 = vmatpush2.msra.mxu0 0.0
    %353 = vmatprep.subr.mxu0 0.0
    %354 = vmatpush2.msra.mxu0 0.0
    %355 = vmatprep.subr.mxu0 0.0
    %356 = vmatpush2.msra.mxu0 0.0
    %357 = vmatprep.subr.mxu0 0.0
    %358 = vmatpush2.msra.mxu0 0.0
    %359 = vmatprep.subr.mxu0 0.0
    %360 = vmatpush2.msra.mxu0 0.0
    %361 = vmatprep.subr.mxu0 0.0
    %362 = vmatpush2.msra.mxu0 0.0
    %363 = vmatprep.subr.mxu0 0.0
    %364 = vmatpush2.msra.mxu0 0.0
    %365 = vmatprep.subr.mxu0 0.0
    %366 = vmatpush2.msra.mxu0 0.0
    %367 = vmatprep.subr.mxu0 0.0
    %368 = vmatpush2.msra.mxu0 0.0
    %369 = vmatprep.subr.mxu0 0.0
    %370 = vmatpush2.msra.mxu0 0.0
    %371 = vmatprep.subr.mxu0 0.0
    %372 = vmatpush2.msra.mxu0 0.0
    %373 = vmatprep.subr.mxu0 0.0
    %374 = vmatpush2.msra.mxu0 0.0
    %375 = vmatprep.subr.mxu0 0.0
    %376 = vmatpush2.msra.mxu0 0.0
    %377 = vmatprep.mubr.f32.mxu0 0.0
    %378 = vmatmul.mubr.f32.gmra.mxu0 %v220
    %v379 = vpop.f32.mrf.mxu0
    %v380 = vadd.f32 0.0, %v379
    %v381 = vpop.f32.mrf.mxu0
    %382 = vdwg.mxu0
    %v383 = vmul.f32 %v380, 0.015625
    %v384 = vadd.f32 %v383, 1e-05
    %v385 = vrsqrt.pop %v384
    %v386 = vmul.f32 %v385, %v78
    %v387 = vlaneseq
    %v388 = vshrl.u32 %v387, 7
    %v389 = vsub.s32 0, %v388
    %v390 = vrot.slane %v386, %v389
    %v391 = vmul.f32 %v297, %v390
    %v392 = vmul.f32 %v298, %v390
    %v393 = vmul.f32 %v299, %v390
    %v394 = vmul.f32 %v300, %v390
    %v395 = vmul.f32 %v301, %v390
    %v396 = vmul.f32 %v302, %v390
    %v397 = vmul.f32 %v303, %v390
    %v398 = vmul.f32 %v304, %v390
    %v399 = vlaneseq
    %v400 = vshrl.u32 %v399, 7
    %v401 = vsub.s32 0, %v400
    %v402 = vrot.slane %v79, %v401
    %v403 = vadd.f32 %v391, %v402
    %v404 = vadd.f32 %v392, %v402
    %v405 = vadd.f32 %v393, %v402
    %v406 = vadd.f32 %v394, %v402
    %v407 = vadd.f32 %v395, %v402
    %v408 = vadd.f32 %v396, %v402
    %v409 = vadd.f32 %v397, %v402
    %v410 = vadd.f32 %v398, %v402
    %v411 = vmax.f32 %v403, 0.0
    %v412 = vmax.f32 %v404, 0.0
    %v413 = vmax.f32 %v405, 0.0
    %v414 = vmax.f32 %v406, 0.0
    %v415 = vmax.f32 %v407, 0.0
    %v416 = vmax.f32 %v408, 0.0
    %v417 = vmax.f32 %v409, 0.0
    %v418 = vmax.f32 %v410, 0.0
    %v419 = vlaneseq
    %v420 = vshrl.u32 %v419, 7
    %v421 = vsub.s32 0, %v420
    %v422 = vrot.slane %v80, %v421
    %423 = vmatprep.subr.mxu0 0.0
    %424 = vmatpush1.msra.mxu0 %v77
    %425 = vmatprep.subr.mxu0 0.0
    %426 = vmatpush1.msra.mxu0 %v76
    %427 = vmatprep.subr.mxu0 0.0
    %428 = vmatpush1.msra.mxu0 %v75
    %429 = vmatprep.subr.mxu0 0.0
    %430 = vmatpush1.msra.mxu0 %v74
    %431 = vmatprep.subr.mxu0 0.0
    %432 = vmatpush1.msra.mxu0 %v73
    %433 = vmatprep.subr.mxu0 0.0
    %434 = vmatpush1.msra.mxu0 %v72
    %435 = vmatprep.subr.mxu0 0.0
    %436 = vmatpush1.msra.mxu0 %v71
    %437 = vmatprep.subr.mxu0 0.0
    %438 = vmatpush1.msra.mxu0 %v70
    %439 = vmatprep.subr.mxu0 0.0
    %440 = vmatpush1.msra.mxu0 %v69
    %441 = vmatprep.subr.mxu0 0.0
    %442 = vmatpush1.msra.mxu0 %v68
    %443 = vmatprep.subr.mxu0 0.0
    %444 = vmatpush1.msra.mxu0 %v67
    %445 = vmatprep.subr.mxu0 0.0
    %446 = vmatpush1.msra.mxu0 %v66
    %447 = vmatprep.subr.mxu0 0.0
    %448 = vmatpush1.msra.mxu0 %v65
    %449 = vmatprep.subr.mxu0 0.0
    %450 = vmatpush1.msra.mxu0 %v64
    %451 = vmatprep.subr.mxu0 0.0
    %452 = vmatpush1.msra.mxu0 %v63
    %453 = vmatprep.subr.mxu0 0.0
    %454 = vmatpush1.msra.mxu0 %v62
    %455 = vmatprep.subr.mxu0 0.0
    %456 = vmatpush2.msra.mxu0 0.0
    %457 = vmatprep.subr.mxu0 0.0
    %458 = vmatpush2.msra.mxu0 0.0
    %459 = vmatprep.subr.mxu0 0.0
    %460 = vmatpush2.msra.mxu0 0.0
    %461 = vmatprep.subr.mxu0 0.0
    %462 = vmatpush2.msra.mxu0 0.0
    %463 = vmatprep.subr.mxu0 0.0
    %464 = vmatpush2.msra.mxu0 0.0
    %465 = vmatprep.subr.mxu0 0.0
    %466 = vmatpush2.msra.mxu0 0.0
    %467 = vmatprep.subr.mxu0 0.0
    %468 = vmatpush2.msra.mxu0 0.0
    %469 = vmatprep.subr.mxu0 0.0
    %470 = vmatpush2.msra.mxu0 0.0
    %471 = vmatprep.subr.mxu0 0.0
    %472 = vmatpush2.msra.mxu0 0.0
    %473 = vmatprep.subr.mxu0 0.0
    %474 = vmatpush2.msra.mxu0 0.0
    %475 = vmatprep.subr.mxu0 0.0
    %476 = vmatpush2.msra.mxu0 0.0
    %477 = vmatprep.subr.mxu0 0.0
    %478 = vmatpush2.msra.mxu0 0.0
    %479 = vmatprep.subr.mxu0 0.0
    %480 = vmatpush2.msra.mxu0 0.0
    %481 = vmatprep.subr.mxu0 0.0
    %482 = vmatpush2.msra.mxu0 0.0
    %483 = vmatprep.subr.mxu0 0.0
    %484 = vmatpush2.msra.mxu0 0.0
    %485 = vmatprep.subr.mxu0 0.0
    %486 = vmatpush2.msra.mxu0 0.0
    %487 = vmatprep.mubr.f32.mxu0 0.0
    %488 = vmatmul.mubr.f32.gmra.mxu0 %v411
    %v489 = vpop.f32.mrf.mxu0
    %v490 = vadd.f32 %v422, %v489
    %v491 = vpop.f32.mrf.mxu0
    %492 = vmatprep.mubr.f32.mxu0 0.0
    %493 = vmatmul.mubr.f32.gmra.mxu0 %v412
    %v494 = vpop.f32.mrf.mxu0
    %v495 = vadd.f32 %v422, %v494
    %v496 = vpop.f32.mrf.mxu0
    %497 = vmatprep.mubr.f32.mxu0 0.0
    %498 = vmatmul.mubr.f32.gmra.mxu0 %v413
    %v499 = vpop.f32.mrf.mxu0
    %v500 = vadd.f32 %v422, %v499
    %v501 = vpop.f32.mrf.mxu0
    %502 = vmatprep.mubr.f32.mxu0 0.0
    %503 = vmatmul.mubr.f32.gmra.mxu0 %v414
    %v504 = vpop.f32.mrf.mxu0
    %v505 = vadd.f32 %v422, %v504
    %v506 = vpop.f32.mrf.mxu0
    %507 = vmatprep.mubr.f32.mxu0 0.0
    %508 = vmatmul.mubr.f32.gmra.mxu0 %v415
    %v509 = vpop.f32.mrf.mxu0
    %v510 = vadd.f32 %v422, %v509
    %v511 = vpop.f32.mrf.mxu0
    %512 = vmatprep.mubr.f32.mxu0 0.0
    %513 = vmatmul.mubr.f32.gmra.mxu0 %v416
    %v514 = vpop.f32.mrf.mxu0
    %v515 = vadd.f32 %v422, %v514
    %v516 = vpop.f32.mrf.mxu0
    %517 = vmatprep.mubr.f32.mxu0 0.0
    %518 = vmatmul.mubr.f32.gmra.mxu0 %v417
    %v519 = vpop.f32.mrf.mxu0
    %v520 = vadd.f32 %v422, %v519
    %v521 = vpop.f32.mrf.mxu0
    %522 = vmatprep.mubr.f32.mxu0 0.0
    %523 = vmatmul.mubr.f32.gmra.mxu0 %v418
    %v524 = vpop.f32.mrf.mxu0
    %v525 = vadd.f32 %v422, %v524
    %v526 = vpop.f32.mrf.mxu0
    %527 = vdwg.mxu0
    %528 = vst [vmem:[#allocation8] sm:$0xff] %v490
    %529 = vst [vmem:[#allocation8 + $0x8] sm:$0xff] %v495
    %530 = vst [vmem:[#allocation8 + $0x10] sm:$0xff] %v500
    %531 = vst [vmem:[#allocation8 + $0x18] sm:$0xff] %v505
    %532 = vst [vmem:[#allocation8 + $0x20] sm:$0xff] %v510
    %533 = vst [vmem:[#allocation8 + $0x28] sm:$0xff] %v515
    %534 = vst [vmem:[#allocation8 + $0x30] sm:$0xff] %v520
    %535 = vst [vmem:[#allocation8 + $0x38] sm:$0xff] %v525
    // Predicated region
    $region26: #{olivettiface_forward.1} parent=1 // pred_check
      _
    $region27: #{olivettiface_forward.1} parent=1 // pred_check_branch
      %537 = sbr.rel (0) target = $region29
    $region28: #{olivettiface_forward.1} parent=1 // pred_region
      %s539 = ssub.s32 1024, 1024
      %540 = vsyncadd [#allocation4], %s539
      %s541 = sshll.u32 [#allocation8], 4
      %s542 = int_to_ptr.vmem [resolvable:$true] %s541
      %547 = dma.vmem_to_hbm [thread:$0]  %s542, 1024, %s3, [#allocation4], 128, 128, 8
    $region29: #{olivettiface_forward.1} parent=1 // pred_fallthru
      _
    // Predicated region
    $region30: #{olivettiface_forward.1} parent=1 // pred_check
      _
    $region31: #{olivettiface_forward.1} parent=1 // pred_check_branch
      %549 = sbr.rel (0) target = $region33
    $region32: #{olivettiface_forward.1} parent=1 // pred_region
      %550 = dma.done [#allocation4], 1024
    $region33: #{olivettiface_forward.1} parent=1 // pred_fallthru
      _
    %551 = vsyncpa [#allocation3], 1
    %552 = vsyncpa [#allocation6], 1
    %553 = vsyncpa [#allocation4], 1

</llo_original>
